<compile_context>
chip_gen: v7x
topology: tpu7x:2x2x1
jax: 0.10.0
libtpu: 0.0.40
codegen_flags: <defaults>
</compile_context>

<pallas_src>
import functools

import jax
import jax.numpy as jnp
from jax import lax
from jax.experimental import pallas as pl
from jax.experimental.pallas import tpu as pltpu

EPS = 1e-5


def rfam2_kernel(x_ref, gamma_ref, beta_ref, pool_ref,
                 b0_ref, b1_ref, b2_ref, bias_ref, o_ref, *, H):
    """All refs are lane-dense 2-D VMEM tiles.

    x_ref     : [N*H, W*C]   input activations (NHWC flattened, lane dense)
    gamma/beta: [1, W*C]     BN affine params, pre-tiled over x in the wrapper
    pool_ref  : [W*C, W*C]   per-channel averaging matrix (already / (N*H*W))
    b0/b1/b2  : [W*C, W*C]   banded conv matrices for ky = 0/1/2 (kx taps + channel mix)
    bias_ref  : [1, W*C]     conv bias, pre-tiled over x
    o_ref     : [N*H, W*C]   output
    H         : static image height (rows per image inside the N*H axis)
    """
    x = x_ref[...]                                            # [R, L] = [32, 128]
    R = x.shape[0]

    # ---- BatchNorm2d (training-mode batch stats), single pass over x ----
    # Row sums first (sublane reduce), then one small pooling matmul:
    # pool[j, l] = 1/(N*H*W) iff lanes j and l carry the same channel.
    s1 = jnp.sum(x, axis=0, keepdims=True)                    # [1, L]
    s2 = jnp.sum(x * x, axis=0, keepdims=True)                # [1, L]
    stats = jnp.concatenate([s1, s2], axis=0)                 # [2, L]
    pooled = jnp.dot(stats, pool_ref[...], preferred_element_type=jnp.float32)
    mean_l = pooled[0:1, :]                                   # per-channel mean, per lane
    ex2_l = pooled[1:2, :]                                    # per-channel E[x^2], per lane
    var_l = ex2_l - mean_l * mean_l                           # biased var (torch train-mode BN)
    inv_l = lax.rsqrt(var_l + EPS)
    scale_l = gamma_ref[...] * inv_l
    shift_l = beta_ref[...] - mean_l * scale_l

    # ---- BN affine + ReLU (lane dense) ----
    y = jnp.maximum(x * scale_l + shift_l, 0.0)               # [R, L]

    # ---- vertical 3-tap neighbourhood via XLU roll + boundary masks ----
    rows = lax.broadcasted_iota(jnp.int32, (R, 1), 0)
    mask_prev = (rows % H != 0).astype(y.dtype)               # zero top row of each image
    mask_next = (rows % H != H - 1).astype(y.dtype)           # zero bottom row of each image
    y_prev = pltpu.roll(y, shift=1, axis=0) * mask_prev       # y[h-1] (zero-padded)
    y_next = pltpu.roll(y, shift=R - 1, axis=0) * mask_next   # y[h+1] (zero-padded)

    # ---- 3x3 conv as 3 dense banded matmuls (no pad buffer, no masked stores) ----
    acc = jnp.dot(y, b1_ref[...], preferred_element_type=jnp.float32)        # ky = 1
    acc = acc + jnp.dot(y_prev, b0_ref[...], preferred_element_type=jnp.float32)  # ky = 0
    acc = acc + jnp.dot(y_next, b2_ref[...], preferred_element_type=jnp.float32)  # ky = 2

    # ---- bias + sigmoid ----
    o_ref[...] = jax.nn.sigmoid(acc + bias_ref[...])


def rfam2_forward(x_nchw, gamma, beta, w_oihw, b):
    """Wrapper: NCHW in, NCHW out (matches the PyTorch module)."""
    N, C, H, W = x_nchw.shape
    Cout = w_oihw.shape[0]
    f32 = jnp.float32

    # Layout: NCHW -> NHWC -> lane-dense [N*H, W*C] (the reshape is free; at
    # production sizes you would accept NHWC / flat input directly instead of
    # paying this transpose in the wrapper).
    x2d = jnp.transpose(x_nchw, (0, 2, 3, 1)).reshape(N * H, W * C).astype(f32)
    w_hwio = jnp.transpose(w_oihw, (2, 3, 1, 0)).astype(f32)          # [3, 3, Cin, Cout]

    def eye(n, k=0):
        return jnp.eye(n, k=k, dtype=f32)

    # Per-channel averaging matrix folded with 1/(N*H*W):
    #   pool[x'*C + c', x*C + c] = 1/(N*H*W) if c' == c else 0.
    pool = jnp.kron(jnp.ones((W, W), f32), eye(C)) / float(N * H * W)

    # Banded conv matrices: fold the kx taps and the Cin->Cout contraction.
    #   B_ky[x'*C + ci, x*Cout + co] = w_hwio[ky, (x' - x) + 1, ci, co]  (|x'-x| <= 1)
    # Out-of-range x' simply has no entry -> implicit zero padding along x.
    def band(ky):
        return sum(jnp.kron(eye(W, -dx), w_hwio[ky, dx + 1]) for dx in (-1, 0, 1))

    b0, b1, b2 = band(0), band(1), band(2)

    # Per-lane BN affine params and conv bias (tiled over x once, host/XLA side).
    gamma_l = jnp.tile(gamma.reshape(1, C).astype(f32), (1, W))        # [1, W*C]
    beta_l = jnp.tile(beta.reshape(1, C).astype(f32), (1, W))          # [1, W*C]
    bias_l = jnp.tile(b.reshape(1, Cout).astype(f32), (1, W))          # [1, W*Cout]

    kernel = functools.partial(rfam2_kernel, H=H)

    out2d = pl.pallas_call(
        kernel,
        out_shape=jax.ShapeDtypeStruct((N * H, W * Cout), f32),
        grid=(1,),
        in_specs=[
            pl.BlockSpec((N * H, W * C), lambda i: (0, 0)),            # x2d
            pl.BlockSpec((1, W * C), lambda i: (0, 0)),                # gamma_l
            pl.BlockSpec((1, W * C), lambda i: (0, 0)),                # beta_l
            pl.BlockSpec((W * C, W * C), lambda i: (0, 0)),            # pool
            pl.BlockSpec((W * C, W * Cout), lambda i: (0, 0)),         # b0
            pl.BlockSpec((W * C, W * Cout), lambda i: (0, 0)),         # b1
            pl.BlockSpec((W * C, W * Cout), lambda i: (0, 0)),         # b2
            pl.BlockSpec((1, W * Cout), lambda i: (0, 0)),             # bias_l
        ],
        out_specs=pl.BlockSpec((N * H, W * Cout), lambda i: (0, 0)),   # lane-dense output
        compiler_params=pltpu.CompilerParams(dimension_semantics=("arbitrary",)),
    )(x2d, gamma_l, beta_l, pool, b0, b1, b2, bias_l)

    return jnp.transpose(out2d.reshape(N, H, W, Cout), (0, 3, 1, 2))   # -> NCHW


def rfam2_reference(x_nchw, gamma, beta, w_oihw, b):
    """Pure-JAX reference of the PyTorch forward (training-mode BN)."""
    mean = jnp.mean(x_nchw, axis=(0, 2, 3), keepdims=True)
    var = jnp.mean((x_nchw - mean) ** 2, axis=(0, 2, 3), keepdims=True)
    y = (x_nchw - mean) / jnp.sqrt(var + EPS)
    y = y * gamma[None, :, None, None] + beta[None, :, None, None]
    y = jnp.maximum(y, 0.0)
    out = jax.lax.conv_general_dilated(
        y, w_oihw, window_strides=(1, 1), padding=((1, 1), (1, 1)),
        dimension_numbers=("NCHW", "OIHW", "NCHW"))
    out = out + b[None, :, None, None]
    return jax.nn.sigmoid(out)


if __name__ == "__main__":
    # Small shapes consistent with the module: forward requires C == out_dim
    # (self.bn = BatchNorm2d(out_dim) is applied directly to the input).
    # W * C = 128 so the flat [N*H, W*C] view is exactly lane dense.
    N, C, H, W = 2, 8, 16, 16
    out_dim = C

    key = jax.random.PRNGKey(0)
    kx, kg, kb, kw, kbi = jax.random.split(key, 5)

    x = jax.random.normal(kx, (N, C, H, W), dtype=jnp.float32)

    # Deterministic parameter init (synthetic; no checkpoint loading).
    gamma = 1.0 + 0.1 * jax.random.normal(kg, (C,), dtype=jnp.float32)       # bn.weight
    beta = 0.1 * jax.random.normal(kb, (C,), dtype=jnp.float32)              # bn.bias
    w3 = 0.1 * jax.random.normal(kw, (out_dim, C, 3, 3), dtype=jnp.float32)  # conv3.weight (OIHW)
    b3 = 0.1 * jax.random.normal(kbi, (out_dim,), dtype=jnp.float32)         # conv3.bias
    # TODO(synk): conv1x1 parameters are unused in the PyTorch forward, so not materialized.

    out = jax.block_until_ready(rfam2_forward(x, gamma, beta, w3, b3))
    ref = jax.block_until_ready(rfam2_reference(x, gamma, beta, w3, b3))

    assert out.shape == (N, out_dim, H, W)
    assert jnp.allclose(out, ref, atol=1e-5, rtol=1e-5), (
        f"max abs err = {jnp.max(jnp.abs(out - ref))}")

    print("KERNEL_OK")
</pallas_src>

<mosaic_0001>
module attributes {stable_mosaic.version = 11 : i64} {
  func.func @rfam2_kernel(%arg0: i32, %arg1: memref<32x128xf32, #tpu.memory_space<vmem>>, %arg2: memref<1x128xf32, #tpu.memory_space<vmem>>, %arg3: memref<1x128xf32, #tpu.memory_space<vmem>>, %arg4: memref<128x128xf32, #tpu.memory_space<vmem>>, %arg5: memref<128x128xf32, #tpu.memory_space<vmem>>, %arg6: memref<128x128xf32, #tpu.memory_space<vmem>>, %arg7: memref<128x128xf32, #tpu.memory_space<vmem>>, %arg8: memref<1x128xf32, #tpu.memory_space<vmem>>, %arg9: memref<32x128xf32, #tpu.memory_space<vmem>>) attributes {dimension_semantics = [#tpu.dimension_semantics<arbitrary>], iteration_bounds = array<i64: 1>, scalar_prefetch = 0 : i64, scratch_operands = 0 : i64, tpu.core_type = #tpu.core_type<tc>, window_params = [{pipeline_mode = #tpu.pipeline_mode<synchronous>, transform_indices = @transform_0, window_bounds = array<i64: 32, 128>}, {pipeline_mode = #tpu.pipeline_mode<synchronous>, transform_indices = @transform_1, window_bounds = array<i64: 1, 128>}, {pipeline_mode = #tpu.pipeline_mode<synchronous>, transform_indices = @transform_2, window_bounds = array<i64: 1, 128>}, {pipeline_mode = #tpu.pipeline_mode<synchronous>, transform_indices = @transform_3, window_bounds = array<i64: 128, 128>}, {pipeline_mode = #tpu.pipeline_mode<synchronous>, transform_indices = @transform_4, window_bounds = array<i64: 128, 128>}, {pipeline_mode = #tpu.pipeline_mode<synchronous>, transform_indices = @transform_5, window_bounds = array<i64: 128, 128>}, {pipeline_mode = #tpu.pipeline_mode<synchronous>, transform_indices = @transform_6, window_bounds = array<i64: 128, 128>}, {pipeline_mode = #tpu.pipeline_mode<synchronous>, transform_indices = @transform_7, window_bounds = array<i64: 1, 128>}, {pipeline_mode = #tpu.pipeline_mode<synchronous>, transform_indices = @transform_8, window_bounds = array<i64: 32, 128>}]} {
    %c0 = arith.constant 0 : index
    %c0_0 = arith.constant 0 : index
    %0 = vector.load %arg1[%c0, %c0_0] : memref<32x128xf32, #tpu.memory_space<vmem>>, vector<32x128xf32>
    %cst = arith.constant dense<0.000000e+00> : vector<128xf32>
    %1 = vector.multi_reduction <add>, %0, %cst [0] : vector<32x128xf32> to vector<128xf32>
    %2 = vector.shape_cast %1 : vector<128xf32> to vector<1x128xf32>
    %3 = arith.mulf %0, %0 : vector<32x128xf32>
    %cst_1 = arith.constant dense<0.000000e+00> : vector<128xf32>
    %4 = vector.multi_reduction <add>, %3, %cst_1 [0] : vector<32x128xf32> to vector<128xf32>
    %5 = vector.shape_cast %4 : vector<128xf32> to vector<1x128xf32>
    %6 = tpu.concatenate %2, %5 in 0 : vector<1x128xf32>, vector<1x128xf32> -> vector<2x128xf32>
    %c0_2 = arith.constant 0 : index
    %c0_3 = arith.constant 0 : index
    %7 = vector.load %arg4[%c0_2, %c0_3] : memref<128x128xf32, #tpu.memory_space<vmem>>, vector<128x128xf32>
    %cst_4 = arith.constant dense<0.000000e+00> : vector<2x128xf32>
    %8 = tpu.matmul %6, %7, %cst_4 {dimension_numbers = #tpu.dot_dimension_numbers<[1], [0], [0], [1], [0, 0, 1, 1], [], []>} : vector<2x128xf32>, vector<128x128xf32>, vector<2x128xf32> -> vector<2x128xf32>
    %9 = vector.extract_strided_slice %8 {offsets = [0, 0], sizes = [1, 128], strides = [1, 1]} : vector<2x128xf32> to vector<1x128xf32>
    %10 = vector.extract_strided_slice %8 {offsets = [1, 0], sizes = [1, 128], strides = [1, 1]} : vector<2x128xf32> to vector<1x128xf32>
    %11 = arith.mulf %9, %9 : vector<1x128xf32>
    %12 = arith.subf %10, %11 : vector<1x128xf32>
    %cst_5 = arith.constant 9.99999974E-6 : f32
    %13 = vector.broadcast %cst_5 : f32 to vector<1x128xf32>
    %14 = arith.addf %12, %13 : vector<1x128xf32>
    %15 = math.rsqrt %14 : vector<1x128xf32>
    %c0_6 = arith.constant 0 : index
    %c0_7 = arith.constant 0 : index
    %16 = vector.load %arg2[%c0_6, %c0_7] : memref<1x128xf32, #tpu.memory_space<vmem>>, vector<1x128xf32>
    %17 = arith.mulf %16, %15 : vector<1x128xf32>
    %c0_8 = arith.constant 0 : index
    %c0_9 = arith.constant 0 : index
    %18 = vector.load %arg3[%c0_8, %c0_9] : memref<1x128xf32, #tpu.memory_space<vmem>>, vector<1x128xf32>
    %19 = arith.mulf %9, %17 : vector<1x128xf32>
    %20 = arith.subf %18, %19 : vector<1x128xf32>
    %21 = vector.broadcast %17 : vector<1x128xf32> to vector<32x128xf32>
    %22 = arith.mulf %0, %21 : vector<32x128xf32>
    %23 = vector.broadcast %20 : vector<1x128xf32> to vector<32x128xf32>
    %24 = arith.addf %22, %23 : vector<32x128xf32>
    %cst_10 = arith.constant 0.000000e+00 : f32
    %25 = vector.broadcast %cst_10 : f32 to vector<32x128xf32>
    %26 = arith.maximumf %24, %25 : vector<32x128xf32>
    %27 = tpu.iota {dimensions = array<i32: 0>} : vector<32x1xi32>
    %c16_i32 = arith.constant 16 : i32
    %c0_i32 = arith.constant 0 : i32
    %28 = arith.cmpi eq, %c16_i32, %c0_i32 : i32
    %c1_i32 = arith.constant 1 : i32
    %29 = arith.select %28, %c1_i32, %c16_i32 : i32
    %30 = vector.broadcast %29 : i32 to vector<32x1xi32>
    %31 = arith.remsi %27, %30 : vector<32x1xi32>
    %c0_i32_11 = arith.constant 0 : i32
    %32 = vector.broadcast %c0_i32_11 : i32 to vector<32x1xi32>
    %33 = arith.cmpi ne, %31, %32 : vector<32x1xi32>
    %c0_i32_12 = arith.constant 0 : i32
    %34 = vector.broadcast %c0_i32_12 : i32 to vector<32x1xi32>
    %35 = arith.cmpi slt, %31, %34 : vector<32x1xi32>
    %c0_i32_13 = arith.constant 0 : i32
    %36 = arith.cmpi slt, %29, %c0_i32_13 : i32
    %37 = vector.broadcast %36 : i1 to vector<32x1xi1>
    %38 = vector.broadcast %37 : vector<32x1xi1> to vector<32x1xi1>
    %39 = arith.xori %35, %38 : vector<32x1xi1>
    %40 = arith.andi %39, %33 : vector<32x1xi1>
    %41 = vector.broadcast %29 : i32 to vector<32x1xi32>
    %42 = arith.addi %31, %41 : vector<32x1xi32>
    %43 = arith.select %40, %42, %31 : vector<32x1xi1>, vector<32x1xi32>
    %c0_i32_14 = arith.constant 0 : i32
    %44 = vector.broadcast %c0_i32_14 : i32 to vector<32x1xi32>
    %45 = arith.cmpi ne, %43, %44 : vector<32x1xi32>
    %46 = arith.extui %45 : vector<32x1xi1> to vector<32x1xi32>
    %47 = arith.sitofp %46 : vector<32x1xi32> to vector<32x1xf32>
    %c16_i32_15 = arith.constant 16 : i32
    %c0_i32_16 = arith.constant 0 : i32
    %48 = arith.cmpi eq, %c16_i32_15, %c0_i32_16 : i32
    %c1_i32_17 = arith.constant 1 : i32
    %49 = arith.select %48, %c1_i32_17, %c16_i32_15 : i32
    %50 = vector.broadcast %49 : i32 to vector<32x1xi32>
    %51 = arith.remsi %27, %50 : vector<32x1xi32>
    %c0_i32_18 = arith.constant 0 : i32
    %52 = vector.broadcast %c0_i32_18 : i32 to vector<32x1xi32>
    %53 = arith.cmpi ne, %51, %52 : vector<32x1xi32>
    %c0_i32_19 = arith.constant 0 : i32
    %54 = vector.broadcast %c0_i32_19 : i32 to vector<32x1xi32>
    %55 = arith.cmpi slt, %51, %54 : vector<32x1xi32>
    %c0_i32_20 = arith.constant 0 : i32
    %56 = arith.cmpi slt, %49, %c0_i32_20 : i32
    %57 = vector.broadcast %56 : i1 to vector<32x1xi1>
    %58 = vector.broadcast %57 : vector<32x1xi1> to vector<32x1xi1>
    %59 = arith.xori %55, %58 : vector<32x1xi1>
    %60 = arith.andi %59, %53 : vector<32x1xi1>
    %61 = vector.broadcast %49 : i32 to vector<32x1xi32>
    %62 = arith.addi %51, %61 : vector<32x1xi32>
    %63 = arith.select %60, %62, %51 : vector<32x1xi1>, vector<32x1xi32>
    %c15_i32 = arith.constant 15 : i32
    %64 = vector.broadcast %c15_i32 : i32 to vector<32x1xi32>
    %65 = arith.cmpi ne, %63, %64 : vector<32x1xi32>
    %66 = arith.extui %65 : vector<32x1xi1> to vector<32x1xi32>
    %67 = arith.sitofp %66 : vector<32x1xi32> to vector<32x1xf32>
    %c1_i32_21 = arith.constant 1 : i32
    %68 = tpu.dynamic_rotate %26 by %c1_i32_21 dim 0 : vector<32x128xf32>, i32 -> vector<32x128xf32>
    %69 = vector.broadcast %47 : vector<32x1xf32> to vector<32x128xf32>
    %70 = arith.mulf %68, %69 : vector<32x128xf32>
    %c31_i32 = arith.constant 31 : i32
    %71 = tpu.dynamic_rotate %26 by %c31_i32 dim 0 : vector<32x128xf32>, i32 -> vector<32x128xf32>
    %72 = vector.broadcast %67 : vector<32x1xf32> to vector<32x128xf32>
    %73 = arith.mulf %71, %72 : vector<32x128xf32>
    %c0_22 = arith.constant 0 : index
    %c0_23 = arith.constant 0 : index
    %74 = vector.load %arg6[%c0_22, %c0_23] : memref<128x128xf32, #tpu.memory_space<vmem>>, vector<128x128xf32>
    %cst_24 = arith.constant dense<0.000000e+00> : vector<32x128xf32>
    %75 = tpu.matmul %26, %74, %cst_24 {dimension_numbers = #tpu.dot_dimension_numbers<[1], [0], [0], [1], [0, 0, 1, 1], [], []>} : vector<32x128xf32>, vector<128x128xf32>, vector<32x128xf32> -> vector<32x128xf32>
    %c0_25 = arith.constant 0 : index
    %c0_26 = arith.constant 0 : index
    %76 = vector.load %arg5[%c0_25, %c0_26] : memref<128x128xf32, #tpu.memory_space<vmem>>, vector<128x128xf32>
    %cst_27 = arith.constant dense<0.000000e+00> : vector<32x128xf32>
    %77 = tpu.matmul %70, %76, %cst_27 {dimension_numbers = #tpu.dot_dimension_numbers<[1], [0], [0], [1], [0, 0, 1, 1], [], []>} : vector<32x128xf32>, vector<128x128xf32>, vector<32x128xf32> -> vector<32x128xf32>
    %78 = arith.addf %75, %77 : vector<32x128xf32>
    %c0_28 = arith.constant 0 : index
    %c0_29 = arith.constant 0 : index
    %79 = vector.load %arg7[%c0_28, %c0_29] : memref<128x128xf32, #tpu.memory_space<vmem>>, vector<128x128xf32>
    %cst_30 = arith.constant dense<0.000000e+00> : vector<32x128xf32>
    %80 = tpu.matmul %73, %79, %cst_30 {dimension_numbers = #tpu.dot_dimension_numbers<[1], [0], [0], [1], [0, 0, 1, 1], [], []>} : vector<32x128xf32>, vector<128x128xf32>, vector<32x128xf32> -> vector<32x128xf32>
    %81 = arith.addf %78, %80 : vector<32x128xf32>
    %c0_31 = arith.constant 0 : index
    %c0_32 = arith.constant 0 : index
    %82 = vector.load %arg8[%c0_31, %c0_32] : memref<1x128xf32, #tpu.memory_space<vmem>>, vector<1x128xf32>
    %83 = vector.broadcast %82 : vector<1x128xf32> to vector<32x128xf32>
    %84 = arith.addf %81, %83 : vector<32x128xf32>
    %85 = arith.negf %84 : vector<32x128xf32>
    %86 = math.exp %85 : vector<32x128xf32>
    %cst_33 = arith.constant 1.000000e+00 : f32
    %87 = vector.broadcast %cst_33 : f32 to vector<32x128xf32>
    %88 = arith.addf %87, %86 : vector<32x128xf32>
    %89 = arith.divf %87, %88 : vector<32x128xf32>
    %c0_34 = arith.constant 0 : index
    %c0_35 = arith.constant 0 : index
    %90 = vector.load %arg9[%c0_34, %c0_35] : memref<32x128xf32, #tpu.memory_space<vmem>>, vector<32x128xf32>
    tpu.vector_store %arg9[%c0_34, %c0_35], %89 {strides = array<i32>} : memref<32x128xf32, #tpu.memory_space<vmem>>, vector<32x128xf32>,
    return
  }
  func.func @transform_0(%arg0: i32) -> (i32, i32) {
    %c0_i32 = arith.constant 0 : i32
    %c0_i32_0 = arith.constant 0 : i32
    %c0_i32_1 = arith.constant 0 : i32
    return %c0_i32, %c0_i32_0 : i32, i32
  }
  func.func @transform_1(%arg0: i32) -> (i32, i32) {
    %c0_i32 = arith.constant 0 : i32
    %c0_i32_0 = arith.constant 0 : i32
    %c0_i32_1 = arith.constant 0 : i32
    return %c0_i32, %c0_i32_0 : i32, i32
  }
  func.func @transform_2(%arg0: i32) -> (i32, i32) {
    %c0_i32 = arith.constant 0 : i32
    %c0_i32_0 = arith.constant 0 : i32
    %c0_i32_1 = arith.constant 0 : i32
    return %c0_i32, %c0_i32_0 : i32, i32
  }
  func.func @transform_3(%arg0: i32) -> (i32, i32) {
    %c0_i32 = arith.constant 0 : i32
    %c0_i32_0 = arith.constant 0 : i32
    %c0_i32_1 = arith.constant 0 : i32
    return %c0_i32, %c0_i32_0 : i32, i32
  }
  func.func @transform_4(%arg0: i32) -> (i32, i32) {
    %c0_i32 = arith.constant 0 : i32
    %c0_i32_0 = arith.constant 0 : i32
    %c0_i32_1 = arith.constant 0 : i32
    return %c0_i32, %c0_i32_0 : i32, i32
  }
  func.func @transform_5(%arg0: i32) -> (i32, i32) {
    %c0_i32 = arith.constant 0 : i32
    %c0_i32_0 = arith.constant 0 : i32
    %c0_i32_1 = arith.constant 0 : i32
    return %c0_i32, %c0_i32_0 : i32, i32
  }
  func.func @transform_6(%arg0: i32) -> (i32, i32) {
    %c0_i32 = arith.constant 0 : i32
    %c0_i32_0 = arith.constant 0 : i32
    %c0_i32_1 = arith.constant 0 : i32
    return %c0_i32, %c0_i32_0 : i32, i32
  }
  func.func @transform_7(%arg0: i32) -> (i32, i32) {
    %c0_i32 = arith.constant 0 : i32
    %c0_i32_0 = arith.constant 0 : i32
    %c0_i32_1 = arith.constant 0 : i32
    return %c0_i32, %c0_i32_0 : i32, i32
  }
  func.func @transform_8(%arg0: i32) -> (i32, i32) {
    %c0_i32 = arith.constant 0 : i32
    %c0_i32_0 = arith.constant 0 : i32
    %c0_i32_1 = arith.constant 0 : i32
    return %c0_i32, %c0_i32_0 : i32, i32
  }
}

</mosaic_0001>

<llo_original>
// kernel: tpu_custom_call.1
$region0: #{tpu_custom_call.1}
  #allocation0 [shape = 'u32[]', space=smem, size = 0x4, offset = 0x4, fixed_abs, tag = 'smem constant byte address 0x4 - core index']
  #allocation1 [shape = 'u32[144,128]{1,0:T(1,128)}', space=vmem, size = 0x12000, scoped, tag = 'internal scratch']
  %s0 = inlined_call_operand.hbm [shape: f32[32,128], index: 0, kind: input, shape index: {}]
  %s1 = inlined_call_operand.vmem [shape: f32[1,128], index: 1, kind: input, shape index: {}]
  %s2 = inlined_call_operand.vmem [shape: f32[1,128], index: 2, kind: input, shape index: {}]
  %s3 = inlined_call_operand.hbm [shape: f32[128,128], index: 3, kind: input, shape index: {}]
  %s4 = inlined_call_operand.hbm [shape: f32[128,128], index: 4, kind: input, shape index: {}]
  %s5 = inlined_call_operand.hbm [shape: f32[128,128], index: 5, kind: input, shape index: {}]
  %s6 = inlined_call_operand.hbm [shape: f32[128,128], index: 6, kind: input, shape index: {}]
  %s7 = inlined_call_operand.vmem [shape: f32[1,128], index: 7, kind: input, shape index: {}]
  %s8 = inlined_call_operand.hbm [shape: f32[32,128], index: 8, kind: output, shape index: {}]
  %s9 = sld [smem:[#allocation0]]
  $region62: #{tpu_custom_call.1} parent=0
    _
  %s11 = ssub.s32 1, %s9
  %s12 = scalar_select 0, %s11, %s9
  $region1: #{tpu_custom_call.1} parent=0
    #allocation2 [shape = 'u8[16384]{0}', space=vmem, size = 0x4000, scoped, tag = 'input window, operand 0, single buffered']
    #allocation3 [shape = 's32[1]{0}', space=sflag, size = 0x4, scoped, tag = 'scoped memory for tpu_custom_call.1']
    #allocation4 [shape = 's32[1]{0}', space=sflag, size = 0x4, scoped, tag = 'scoped memory for tpu_custom_call.1']
    #allocation5 [shape = 'u8[65536]{0}', space=vmem, size = 0x10000, scoped, tag = 'input window, operand 3, single buffered']
    #allocation6 [shape = 's32[1]{0}', space=sflag, size = 0x4, scoped, tag = 'scoped memory for tpu_custom_call.1']
    #allocation7 [shape = 'u8[65536]{0}', space=vmem, size = 0x10000, scoped, tag = 'input window, operand 4, single buffered']
    #allocation8 [shape = 'u8[65536]{0}', space=vmem, size = 0x10000, scoped, tag = 'input window, operand 5, single buffered']
    #allocation9 [shape = 's32[1]{0}', space=sflag, size = 0x4, scoped, tag = 'scoped memory for tpu_custom_call.1']
    #allocation10 [shape = 'u8[65536]{0}', space=vmem, size = 0x10000, scoped, tag = 'input window, operand 6, single buffered']
    #allocation11 [shape = 'u8[16384]{0}', space=vmem, size = 0x4000, scoped, tag = 'output window, operand 0, single buffered']
    %13 = vsyncpa [#allocation3], 0
    %14 = vsyncpa [#allocation6], 0
    %15 = vsyncpa [#allocation9], 0
    %16 = vsyncpa [#allocation4], 0
    // Predicated region
    $region2: #{tpu_custom_call.1} parent=1 // pred_check
      _
    $region3: #{tpu_custom_call.1} parent=1 // pred_check_branch
      %18 = sbr.rel (0) target = $region5
    $region4: #{tpu_custom_call.1} parent=1 // pred_region
      %s20 = ssub.s32 512, 512
      %21 = vsyncadd [#allocation3], %s20
      %s22 = sshll.u32 [#allocation2], 4
      %s23 = int_to_ptr.vmem [resolvable:$true] %s22
      %28 = dma.hbm_to_vmem [thread:$0]  %s0, 512, %s23, [#allocation3], 128, 128, 8
    $region5: #{tpu_custom_call.1} parent=1 // pred_fallthru
      _
    // Predicated region
    $region6: #{tpu_custom_call.1} parent=1 // pred_check
      _
    $region7: #{tpu_custom_call.1} parent=1 // pred_check_branch
      %30 = sbr.rel (0) target = $region9
    $region8: #{tpu_custom_call.1} parent=1 // pred_region
      _
    $region9: #{tpu_custom_call.1} parent=1 // pred_fallthru
      _
    // Predicated region
    $region10: #{tpu_custom_call.1} parent=1 // pred_check
      _
    $region11: #{tpu_custom_call.1} parent=1 // pred_check_branch
      %32 = sbr.rel (0) target = $region13
    $region12: #{tpu_custom_call.1} parent=1 // pred_region
      _
    $region13: #{tpu_custom_call.1} parent=1 // pred_fallthru
      _
    // Predicated region
    $region14: #{tpu_custom_call.1} parent=1 // pred_check
      _
    $region15: #{tpu_custom_call.1} parent=1 // pred_check_branch
      %34 = sbr.rel (0) target = $region17
    $region16: #{tpu_custom_call.1} parent=1 // pred_region
      %s36 = ssub.s32 2048, 2048
      %37 = vsyncadd [#allocation6], %s36
      %s38 = sshll.u32 [#allocation5], 4
      %s39 = int_to_ptr.vmem [resolvable:$true] %s38
      %44 = dma.hbm_to_vmem [thread:$0]  %s3, 2048, %s39, [#allocation6], 128, 128, 8
    $region17: #{tpu_custom_call.1} parent=1 // pred_fallthru
      _
    // Predicated region
    $region18: #{tpu_custom_call.1} parent=1 // pred_check
      _
    $region19: #{tpu_custom_call.1} parent=1 // pred_check_branch
      %46 = sbr.rel (0) target = $region21
    $region20: #{tpu_custom_call.1} parent=1 // pred_region
      %s48 = ssub.s32 2048, 2048
      %49 = vsyncadd [#allocation6], %s48
      %s50 = sshll.u32 [#allocation7], 4
      %s51 = int_to_ptr.vmem [resolvable:$true] %s50
      %56 = dma.hbm_to_vmem [thread:$0]  %s4, 2048, %s51, [#allocation6], 128, 128, 8
    $region21: #{tpu_custom_call.1} parent=1 // pred_fallthru
      _
    // Predicated region
    $region22: #{tpu_custom_call.1} parent=1 // pred_check
      _
    $region23: #{tpu_custom_call.1} parent=1 // pred_check_branch
      %58 = sbr.rel (0) target = $region25
    $region24: #{tpu_custom_call.1} parent=1 // pred_region
      %s60 = ssub.s32 2048, 2048
      %61 = vsyncadd [#allocation9], %s60
      %s62 = sshll.u32 [#allocation8], 4
      %s63 = int_to_ptr.vmem [resolvable:$true] %s62
      %68 = dma.hbm_to_vmem [thread:$0]  %s5, 2048, %s63, [#allocation9], 128, 128, 8
    $region25: #{tpu_custom_call.1} parent=1 // pred_fallthru
      _
    // Predicated region
    $region26: #{tpu_custom_call.1} parent=1 // pred_check
      _
    $region27: #{tpu_custom_call.1} parent=1 // pred_check_branch
      %70 = sbr.rel (0) target = $region29
    $region28: #{tpu_custom_call.1} parent=1 // pred_region
      %s72 = ssub.s32 2048, 2048
      %73 = vsyncadd [#allocation9], %s72
      %s74 = sshll.u32 [#allocation10], 4
      %s75 = int_to_ptr.vmem [resolvable:$true] %s74
      %80 = dma.hbm_to_vmem [thread:$0]  %s6, 2048, %s75, [#allocation9], 128, 128, 8
    $region29: #{tpu_custom_call.1} parent=1 // pred_fallthru
      _
    // Predicated region
    $region30: #{tpu_custom_call.1} parent=1 // pred_check
      _
    $region31: #{tpu_custom_call.1} parent=1 // pred_check_branch
      %82 = sbr.rel (0) target = $region33
    $region32: #{tpu_custom_call.1} parent=1 // pred_region
      _
    $region33: #{tpu_custom_call.1} parent=1 // pred_fallthru
      _
    // Predicated region
    $region34: #{tpu_custom_call.1} parent=1 // pred_check
      _
    $region35: #{tpu_custom_call.1} parent=1 // pred_check_branch
      %84 = sbr.rel (0) target = $region37
    $region36: #{tpu_custom_call.1} parent=1 // pred_region
      %85 = dma.done [#allocation3], 512
    $region37: #{tpu_custom_call.1} parent=1 // pred_fallthru
      _
    // Predicated region
    $region38: #{tpu_custom_call.1} parent=1 // pred_check
      _
    $region39: #{tpu_custom_call.1} parent=1 // pred_check_branch
      %87 = sbr.rel (0) target = $region41
    $region40: #{tpu_custom_call.1} parent=1 // pred_region
      %88 = dma.done [#allocation6], 2048
    $region41: #{tpu_custom_call.1} parent=1 // pred_fallthru
      _
    // Predicated region
    $region42: #{tpu_custom_call.1} parent=1 // pred_check
      _
    $region43: #{tpu_custom_call.1} parent=1 // pred_check_branch
      %90 = sbr.rel (0) target = $region45
    $region44: #{tpu_custom_call.1} parent=1 // pred_region
      %91 = dma.done [#allocation6], 2048
    $region45: #{tpu_custom_call.1} parent=1 // pred_fallthru
      _
    // Predicated region
    $region46: #{tpu_custom_call.1} parent=1 // pred_check
      _
    $region47: #{tpu_custom_call.1} parent=1 // pred_check_branch
      %93 = sbr.rel (0) target = $region49
    $region48: #{tpu_custom_call.1} parent=1 // pred_region
      %94 = dma.done [#allocation9], 2048
    $region49: #{tpu_custom_call.1} parent=1 // pred_fallthru
      _
    // Predicated region
    $region50: #{tpu_custom_call.1} parent=1 // pred_check
      _
    $region51: #{tpu_custom_call.1} parent=1 // pred_check_branch
      %96 = sbr.rel (0) target = $region53
    $region52: #{tpu_custom_call.1} parent=1 // pred_region
      %97 = dma.done [#allocation9], 2048
    $region53: #{tpu_custom_call.1} parent=1 // pred_fallthru
      _
    %v98 = vld [vmem:[#allocation2] sm:$0xff]
    %v99 = vld [vmem:[#allocation2 + $0x8] sm:$0xff]
    %v100 = vld [vmem:[#allocation2 + $0x10] sm:$0xff]
    %v101 = vld [vmem:[#allocation2 + $0x18] sm:$0xff]
    %v102 = vadd.f32 %v98, %v99
    %v103 = vadd.f32 %v102, %v100
    %v104 = vadd.f32 %v103, %v101
    %v105 = vrot.slane %v104, 4
    %v106 = vadd.f32 %v104, %v105
    %v107 = vrot.slane %v106, 2
    %v108 = vadd.f32 %v106, %v107
    %v109 = vrot.slane %v108, 1
    %v110 = vadd.f32 %v108, %v109
    %v111 = vmul.f32 %v98, %v98
    %v112 = vmul.f32 %v99, %v99
    %v113 = vmul.f32 %v100, %v100
    %v114 = vmul.f32 %v101, %v101
    %v115 = vadd.f32 %v111, %v112
    %v116 = vadd.f32 %v115, %v113
    %v117 = vadd.f32 %v116, %v114
    %v118 = vrot.slane %v117, 4
    %v119 = vadd.f32 %v117, %v118
    %v120 = vrot.slane %v119, 2
    %v121 = vadd.f32 %v119, %v120
    %v122 = vrot.slane %v121, 1
    %v123 = vadd.f32 %v121, %v122
    %vm124 = vcmask 1040384
    %v125 = vsel %vm124, %v110, %v123
    %v126 = vld [vmem:[#allocation5] sm:$0xff]
    %v127 = vld [vmem:[#allocation5 + $0x8] sm:$0xff]
    %v128 = vld [vmem:[#allocation5 + $0x10] sm:$0xff]
    %v129 = vld [vmem:[#allocation5 + $0x18] sm:$0xff]
    %v130 = vld [vmem:[#allocation5 + $0x20] sm:$0xff]
    %v131 = vld [vmem:[#allocation5 + $0x28] sm:$0xff]
    %v132 = vld [vmem:[#allocation5 + $0x30] sm:$0xff]
    %v133 = vld [vmem:[#allocation5 + $0x38] sm:$0xff]
    %v134 = vld [vmem:[#allocation5 + $0x40] sm:$0xff]
    %v135 = vld [vmem:[#allocation5 + $0x48] sm:$0xff]
    %v136 = vld [vmem:[#allocation5 + $0x50] sm:$0xff]
    %v137 = vld [vmem:[#allocation5 + $0x58] sm:$0xff]
    %v138 = vld [vmem:[#allocation5 + $0x60] sm:$0xff]
    %v139 = vld [vmem:[#allocation5 + $0x68] sm:$0xff]
    %v140 = vld [vmem:[#allocation5 + $0x70] sm:$0xff]
    %v141 = vld [vmem:[#allocation5 + $0x78] sm:$0xff]
    %142 = vmatprep.subr.mxu0 0.0
    %143 = vmatpush1.msra.mxu0 %v126
    %144 = vmatprep.subr.mxu0 0.0
    %145 = vmatpush1.msra.mxu0 %v127
    %146 = vmatprep.subr.mxu0 0.0
    %147 = vmatpush1.msra.mxu0 %v128
    %148 = vmatprep.subr.mxu0 0.0
    %149 = vmatpush1.msra.mxu0 %v129
    %150 = vmatprep.subr.mxu0 0.0
    %151 = vmatpush1.msra.mxu0 %v130
    %152 = vmatprep.subr.mxu0 0.0
    %153 = vmatpush1.msra.mxu0 %v131
    %154 = vmatprep.subr.mxu0 0.0
    %155 = vmatpush1.msra.mxu0 %v132
    %156 = vmatprep.subr.mxu0 0.0
    %157 = vmatpush1.msra.mxu0 %v133
    %158 = vmatprep.subr.mxu0 0.0
    %159 = vmatpush1.msra.mxu0 %v134
    %160 = vmatprep.subr.mxu0 0.0
    %161 = vmatpush1.msra.mxu0 %v135
    %162 = vmatprep.subr.mxu0 0.0
    %163 = vmatpush1.msra.mxu0 %v136
    %164 = vmatprep.subr.mxu0 0.0
    %165 = vmatpush1.msra.mxu0 %v137
    %166 = vmatprep.subr.mxu0 0.0
    %167 = vmatpush1.msra.mxu0 %v138
    %168 = vmatprep.subr.mxu0 0.0
    %169 = vmatpush1.msra.mxu0 %v139
    %170 = vmatprep.subr.mxu0 0.0
    %171 = vmatpush1.msra.mxu0 %v140
    %172 = vmatprep.subr.mxu0 0.0
    %173 = vmatpush1.msra.mxu0 %v141
    %174 = vmatprep.subr.mxu0 0.0
    %175 = vmatpush1.msra.mxu0 0.0
    %176 = vmatprep.subr.mxu0 0.0
    %177 = vmatpush1.msra.mxu0 0.0
    %178 = vmatprep.subr.mxu0 0.0
    %179 = vmatpush1.msra.mxu0 0.0
    %180 = vmatprep.subr.mxu0 0.0
    %181 = vmatpush1.msra.mxu0 0.0
    %182 = vmatprep.subr.mxu0 0.0
    %183 = vmatpush1.msra.mxu0 0.0
    %184 = vmatprep.subr.mxu0 0.0
    %185 = vmatpush1.msra.mxu0 0.0
    %186 = vmatprep.subr.mxu0 0.0
    %187 = vmatpush1.msra.mxu0 0.0
    %188 = vmatprep.subr.mxu0 0.0
    %189 = vmatpush1.msra.mxu0 0.0
    %190 = vmatprep.subr.mxu0 0.0
    %191 = vmatpush1.msra.mxu0 0.0
    %192 = vmatprep.subr.mxu0 0.0
    %193 = vmatpush1.msra.mxu0 0.0
    %194 = vmatprep.subr.mxu0 0.0
    %195 = vmatpush1.msra.mxu0 0.0
    %196 = vmatprep.subr.mxu0 0.0
    %197 = vmatpush1.msra.mxu0 0.0
    %198 = vmatprep.subr.mxu0 0.0
    %199 = vmatpush1.msra.mxu0 0.0
    %200 = vmatprep.subr.mxu0 0.0
    %201 = vmatpush1.msra.mxu0 0.0
    %202 = vmatprep.subr.mxu0 0.0
    %203 = vmatpush1.msra.mxu0 0.0
    %204 = vmatprep.subr.mxu0 0.0
    %205 = vmatpush1.msra.mxu0 0.0
    %206 = vmatprep.mubr.f32.mxu0 0.0
    %207 = vmatmul.mubr.f32.gmra.mrb[0].mxu0 %v125
    %v208 = vpop.f32.mrb[0].mxu0
    %v209 = vadd.f32 0.0, %v208
    %v210 = vpop.f32.mrb[0].mxu0
    %211 = vdwg.mxu0
    %v212 = vmul.f32 %v209, %v209
    %v214 = vrot.slane %v212, 7
    %v216 = vsub.f32 %v209, %v214
    %v217 = vadd.f32 %v216, 1e-05
    %v218 = vrsqrt.pop %v217
    %v219 = vld [vmem:[%s1] sm:$0x1]
    %v222 = vunpack.c.l.s4 1966171168
    %v223 = vunpack.c.0.s8 %v222
    %v224 = vlaneseq
    %v225 = vshrl.u32 %v224, 7
    %v226 = vsub.s32 %v223, %v225
    %v227 = vrot.slane %v218, %v226
    %v228 = vcombine.high %v227, %v227
    %v230 = vunpack.c.l.s4 1966171168
    %v231 = vunpack.c.0.s8 %v230
    %v232 = vlaneseq
    %v233 = vshrl.u32 %v232, 7
    %v234 = vsub.s32 %v231, %v233
    %v235 = vrot.slane %v228, %v234
    %v237 = vmul.f32 %v219, %v235
    %v238 = vld [vmem:[%s2] sm:$0x1]
    %v239 = vmul.f32 %v209, %v237
    %v240 = vsub.f32 %v238, %v239
    %v242 = vlaneseq
    %v243 = vshrl.u32 %v242, 7
    %v244 = vsub.s32 0, %v243
    %v245 = vrot.slane %v237, %v244
    %v247 = vmul.f32 %v98, %v245
    %v248 = vmul.f32 %v99, %v245
    %v249 = vmul.f32 %v100, %v245
    %v250 = vmul.f32 %v101, %v245
    %v252 = vlaneseq
    %v253 = vshrl.u32 %v252, 7
    %v254 = vsub.s32 0, %v253
    %v255 = vrot.slane %v240, %v254
    %v257 = vadd.f32 %v247, %v255
    %v258 = vadd.f32 %v248, %v255
    %v259 = vadd.f32 %v249, %v255
    %v260 = vadd.f32 %v250, %v255
    %v261 = vmax.f32 %v257, 0.0
    %v262 = vmax.f32 %v258, 0.0
    %v263 = vmax.f32 %v259, 0.0
    %v264 = vmax.f32 %v260, 0.0
    %v265 = vlaneseq
    %v266 = vshrl.u32 %v265, 7
    %v267 = vadd.s32 %v266, 8
    %v268 = vadd.s32 %v266, 16
    %v269 = vadd.s32 %v266, 24
    %vm270 = vcmp.lt.s32.totalorder %v266, 0
    %v271 = vsub.s32 0, %v266
    %v272 = vsel %vm270, %v271, %v266
    %v273 = vshrl.u32 %v272, 4
    %v274 = vand.u32 %v272, 15
    %v275 = vsub.s32 0, %v274
    %v276 = vsel %vm270, %v275, %v274
    %vm277 = vcmp.lt.s32.totalorder %v267, 0
    %v278 = vsub.s32 0, %v267
    %v279 = vsel %vm277, %v278, %v267
    %v280 = vshrl.u32 %v279, 4
    %v281 = vand.u32 %v279, 15
    %v282 = vsub.s32 0, %v281
    %v283 = vsel %vm277, %v282, %v281
    %vm284 = vcmp.lt.s32.totalorder %v268, 0
    %v285 = vsub.s32 0, %v268
    %v286 = vsel %vm284, %v285, %v268
    %v287 = vshrl.u32 %v286, 4
    %v288 = vand.u32 %v286, 15
    %v289 = vsub.s32 0, %v288
    %v290 = vsel %vm284, %v289, %v288
    %vm291 = vcmp.lt.s32.totalorder %v269, 0
    %v292 = vsub.s32 0, %v269
    %v293 = vsel %vm291, %v292, %v269
    %v294 = vshrl.u32 %v293, 4
    %v295 = vand.u32 %v293, 15
    %v296 = vsub.s32 0, %v295
    %v297 = vsel %vm291, %v296, %v295
    %vm298 = vcmp.ne.s32.totalorder %v276, 0
    %vm299 = vcmp.ne.s32.totalorder %v283, 0
    %vm300 = vcmp.ne.s32.totalorder %v290, 0
    %vm301 = vcmp.ne.s32.totalorder %v297, 0
    %vm302 = vcmp.lt.s32.totalorder %v276, 0
    %vm303 = vcmp.lt.s32.totalorder %v283, 0
    %vm304 = vcmp.lt.s32.totalorder %v290, 0
    %vm305 = vcmp.lt.s32.totalorder %v297, 0
    %vm306 = vmand %vm302, %vm298
    %vm307 = vmand %vm303, %vm299
    %vm308 = vmand %vm304, %vm300
    %vm309 = vmand %vm305, %vm301
    %v310 = vadd.s32 %v276, 16
    %v311 = vadd.s32 %v283, 16
    %v312 = vadd.s32 %v290, 16
    %v313 = vadd.s32 %v297, 16
    %v314 = vsel %vm306, %v310, %v276
    %v315 = vsel %vm307, %v311, %v283
    %v316 = vsel %vm308, %v312, %v290
    %v317 = vsel %vm309, %v313, %v297
    %vm318 = vcmp.ne.s32.totalorder %v314, 0
    %vm319 = vcmp.ne.s32.totalorder %v315, 0
    %vm320 = vcmp.ne.s32.totalorder %v316, 0
    %vm321 = vcmp.ne.s32.totalorder %v317, 0
    %v322 = vsel %vm318, 1, 0
    %v323 = vsel %vm319, 1, 0
    %v324 = vsel %vm320, 1, 0
    %v325 = vsel %vm321, 1, 0
    %v326 = vcvt.s32.f32 %v322
    %v327 = vcvt.s32.f32 %v323
    %v328 = vcvt.s32.f32 %v324
    %v329 = vcvt.s32.f32 %v325
    %vm330 = vcmp.ne.s32.totalorder %v314, 15
    %vm331 = vcmp.ne.s32.totalorder %v315, 15
    %vm332 = vcmp.ne.s32.totalorder %v316, 15
    %vm333 = vcmp.ne.s32.totalorder %v317, 15
    %v334 = vsel %vm330, 1, 0
    %v335 = vsel %vm331, 1, 0
    %v336 = vsel %vm332, 1, 0
    %v337 = vsel %vm333, 1, 0
    %v338 = vcvt.s32.f32 %v334
    %v339 = vcvt.s32.f32 %v335
    %v340 = vcvt.s32.f32 %v336
    %v341 = vcvt.s32.f32 %v337
    %v342 = vrot.slane %v261, 7
    %v343 = vrot.slane %v262, 7
    %v344 = vrot.slane %v263, 7
    %v345 = vrot.slane %v264, 7
    %vm346 = vcmp.lt.s32.totalorder %v266, 1
    %v347 = vsel %vm346, %v344, %v345
    %v348 = vsel %vm346, %v343, %v344
    %v349 = vsel %vm346, %v342, %v343
    %v350 = vsel %vm346, %v345, %v342
    %v351 = vmul.f32 %v350, %v326
    %v352 = vmul.f32 %v349, %v327
    %v353 = vmul.f32 %v348, %v328
    %v354 = vmul.f32 %v347, %v329
    %v355 = vrot.slane %v261, 1
    %v356 = vrot.slane %v262, 1
    %v357 = vrot.slane %v263, 1
    %v358 = vrot.slane %v264, 1
    %vm359 = vcmp.lt.s32.totalorder %v266, 7
    %v360 = vsel %vm359, %v357, %v358
    %v361 = vsel %vm359, %v356, %v357
    %v362 = vsel %vm359, %v355, %v356
    %v363 = vsel %vm359, %v358, %v355
    %v364 = vmul.f32 %v362, %v338
    %v365 = vmul.f32 %v361, %v339
    %v366 = vmul.f32 %v360, %v340
    %v367 = vmul.f32 %v363, %v341
    %v368 = vld [vmem:[#allocation8] sm:$0xff]
    %v369 = vld [vmem:[#allocation8 + $0x8] sm:$0xff]
    %v370 = vld [vmem:[#allocation8 + $0x10] sm:$0xff]
    %v371 = vld [vmem:[#allocation8 + $0x18] sm:$0xff]
    %v372 = vld [vmem:[#allocation8 + $0x20] sm:$0xff]
    %v373 = vld [vmem:[#allocation8 + $0x28] sm:$0xff]
    %v374 = vld [vmem:[#allocation8 + $0x30] sm:$0xff]
    %v375 = vld [vmem:[#allocation8 + $0x38] sm:$0xff]
    %v376 = vld [vmem:[#allocation8 + $0x40] sm:$0xff]
    %v377 = vld [vmem:[#allocation8 + $0x48] sm:$0xff]
    %v378 = vld [vmem:[#allocation8 + $0x50] sm:$0xff]
    %v379 = vld [vmem:[#allocation8 + $0x58] sm:$0xff]
    %v380 = vld [vmem:[#allocation8 + $0x60] sm:$0xff]
    %v381 = vld [vmem:[#allocation8 + $0x68] sm:$0xff]
    %v382 = vld [vmem:[#allocation8 + $0x70] sm:$0xff]
    %v383 = vld [vmem:[#allocation8 + $0x78] sm:$0xff]
    %v384 = vld [vmem:[#allocation7] sm:$0xff]
    %v385 = vld [vmem:[#allocation7 + $0x8] sm:$0xff]
    %v386 = vld [vmem:[#allocation7 + $0x10] sm:$0xff]
    %v387 = vld [vmem:[#allocation7 + $0x18] sm:$0xff]
    %v388 = vld [vmem:[#allocation7 + $0x20] sm:$0xff]
    %v389 = vld [vmem:[#allocation7 + $0x28] sm:$0xff]
    %v390 = vld [vmem:[#allocation7 + $0x30] sm:$0xff]
    %v391 = vld [vmem:[#allocation7 + $0x38] sm:$0xff]
    %v392 = vld [vmem:[#allocation7 + $0x40] sm:$0xff]
    %v393 = vld [vmem:[#allocation7 + $0x48] sm:$0xff]
    %v394 = vld [vmem:[#allocation7 + $0x50] sm:$0xff]
    %v395 = vld [vmem:[#allocation7 + $0x58] sm:$0xff]
    %v396 = vld [vmem:[#allocation7 + $0x60] sm:$0xff]
    %v397 = vld [vmem:[#allocation7 + $0x68] sm:$0xff]
    %v398 = vld [vmem:[#allocation7 + $0x70] sm:$0xff]
    %v399 = vld [vmem:[#allocation7 + $0x78] sm:$0xff]
    %400 = vmatprep.subr.mxu0 0.0
    %401 = vmatpush1.msra.mxu0 %v384
    %402 = vmatprep.subr.mxu0 0.0
    %403 = vmatpush1.msra.mxu0 %v385
    %404 = vmatprep.subr.mxu0 0.0
    %405 = vmatpush1.msra.mxu0 %v386
    %406 = vmatprep.subr.mxu0 0.0
    %407 = vmatpush1.msra.mxu0 %v387
    %408 = vmatprep.subr.mxu0 0.0
    %409 = vmatpush1.msra.mxu0 %v388
    %410 = vmatprep.subr.mxu0 0.0
    %411 = vmatpush1.msra.mxu0 %v389
    %412 = vmatprep.subr.mxu0 0.0
    %413 = vmatpush1.msra.mxu0 %v390
    %414 = vmatprep.subr.mxu0 0.0
    %415 = vmatpush1.msra.mxu0 %v391
    %416 = vmatprep.subr.mxu0 0.0
    %417 = vmatpush1.msra.mxu0 %v392
    %418 = vmatprep.subr.mxu0 0.0
    %419 = vmatpush1.msra.mxu0 %v393
    %420 = vmatprep.subr.mxu0 0.0
    %421 = vmatpush1.msra.mxu0 %v394
    %422 = vmatprep.subr.mxu0 0.0
    %423 = vmatpush1.msra.mxu0 %v395
    %424 = vmatprep.subr.mxu0 0.0
    %425 = vmatpush1.msra.mxu0 %v396
    %426 = vmatprep.subr.mxu0 0.0
    %427 = vmatpush1.msra.mxu0 %v397
    %428 = vmatprep.subr.mxu0 0.0
    %429 = vmatpush1.msra.mxu0 %v398
    %430 = vmatprep.subr.mxu0 0.0
    %431 = vmatpush1.msra.mxu0 %v399
    %432 = vmatprep.subr.mxu0 0.0
    %433 = vmatpush1.msra.mxu0 0.0
    %434 = vmatprep.subr.mxu0 0.0
    %435 = vmatpush1.msra.mxu0 0.0
    %436 = vmatprep.subr.mxu0 0.0
    %437 = vmatpush1.msra.mxu0 0.0
    %438 = vmatprep.subr.mxu0 0.0
    %439 = vmatpush1.msra.mxu0 0.0
    %440 = vmatprep.subr.mxu0 0.0
    %441 = vmatpush1.msra.mxu0 0.0
    %442 = vmatprep.subr.mxu0 0.0
    %443 = vmatpush1.msra.mxu0 0.0
    %444 = vmatprep.subr.mxu0 0.0
    %445 = vmatpush1.msra.mxu0 0.0
    %446 = vmatprep.subr.mxu0 0.0
    %447 = vmatpush1.msra.mxu0 0.0
    %448 = vmatprep.subr.mxu0 0.0
    %449 = vmatpush1.msra.mxu0 0.0
    %450 = vmatprep.subr.mxu0 0.0
    %451 = vmatpush1.msra.mxu0 0.0
    %452 = vmatprep.subr.mxu0 0.0
    %453 = vmatpush1.msra.mxu0 0.0
    %454 = vmatprep.subr.mxu0 0.0
    %455 = vmatpush1.msra.mxu0 0.0
    %456 = vmatprep.subr.mxu0 0.0
    %457 = vmatpush1.msra.mxu0 0.0
    %458 = vmatprep.subr.mxu0 0.0
    %459 = vmatpush1.msra.mxu0 0.0
    %460 = vmatprep.subr.mxu0 0.0
    %461 = vmatpush1.msra.mxu0 0.0
    %462 = vmatprep.subr.mxu0 0.0
    %463 = vmatpush1.msra.mxu0 0.0
    %464 = vmatprep.mubr.f32.mxu0 0.0
    %465 = vmatmul.mubr.f32.gmra.mrb[0].mxu0 %v351
    %v466 = vpop.f32.mrb[0].mxu0
    %v467 = vadd.f32 0.0, %v466
    %v468 = vpop.f32.mrb[0].mxu0
    %469 = vmatprep.mubr.f32.mxu0 0.0
    %470 = vmatmul.mubr.f32.gmra.mrb[0].mxu0 %v352
    %v471 = vpop.f32.mrb[0].mxu0
    %v472 = vadd.f32 0.0, %v471
    %v473 = vpop.f32.mrb[0].mxu0
    %474 = vmatprep.mubr.f32.mxu0 0.0
    %475 = vmatmul.mubr.f32.gmra.mrb[0].mxu0 %v353
    %v476 = vpop.f32.mrb[0].mxu0
    %v477 = vadd.f32 0.0, %v476
    %v478 = vpop.f32.mrb[0].mxu0
    %479 = vmatprep.mubr.f32.mxu0 0.0
    %480 = vmatmul.mubr.f32.gmra.mrb[0].mxu0 %v354
    %v481 = vpop.f32.mrb[0].mxu0
    %v482 = vadd.f32 0.0, %v481
    %v483 = vpop.f32.mrb[0].mxu0
    %484 = vdwg.mxu0
    %485 = vmatprep.subr.mxu0 0.0
    %486 = vmatpush1.msra.mxu0 %v368
    %487 = vmatprep.subr.mxu0 0.0
    %488 = vmatpush1.msra.mxu0 %v369
    %489 = vmatprep.subr.mxu0 0.0
    %490 = vmatpush1.msra.mxu0 %v370
    %491 = vmatprep.subr.mxu0 0.0
    %492 = vmatpush1.msra.mxu0 %v371
    %493 = vmatprep.subr.mxu0 0.0
    %494 = vmatpush1.msra.mxu0 %v372
    %495 = vmatprep.subr.mxu0 0.0
    %496 = vmatpush1.msra.mxu0 %v373
    %497 = vmatprep.subr.mxu0 0.0
    %498 = vmatpush1.msra.mxu0 %v374
    %499 = vmatprep.subr.mxu0 0.0
    %500 = vmatpush1.msra.mxu0 %v375
    %501 = vmatprep.subr.mxu0 0.0
    %502 = vmatpush1.msra.mxu0 %v376
    %503 = vmatprep.subr.mxu0 0.0
    %504 = vmatpush1.msra.mxu0 %v377
    %505 = vmatprep.subr.mxu0 0.0
    %506 = vmatpush1.msra.mxu0 %v378
    %507 = vmatprep.subr.mxu0 0.0
    %508 = vmatpush1.msra.mxu0 %v379
    %509 = vmatprep.subr.mxu0 0.0
    %510 = vmatpush1.msra.mxu0 %v380
    %511 = vmatprep.subr.mxu0 0.0
    %512 = vmatpush1.msra.mxu0 %v381
    %513 = vmatprep.subr.mxu0 0.0
    %514 = vmatpush1.msra.mxu0 %v382
    %515 = vmatprep.subr.mxu0 0.0
    %516 = vmatpush1.msra.mxu0 %v383
    %517 = vmatprep.subr.mxu0 0.0
    %518 = vmatpush1.msra.mxu0 0.0
    %519 = vmatprep.subr.mxu0 0.0
    %520 = vmatpush1.msra.mxu0 0.0
    %521 = vmatprep.subr.mxu0 0.0
    %522 = vmatpush1.msra.mxu0 0.0
    %523 = vmatprep.subr.mxu0 0.0
    %524 = vmatpush1.msra.mxu0 0.0
    %525 = vmatprep.subr.mxu0 0.0
    %526 = vmatpush1.msra.mxu0 0.0
    %527 = vmatprep.subr.mxu0 0.0
    %528 = vmatpush1.msra.mxu0 0.0
    %529 = vmatprep.subr.mxu0 0.0
    %530 = vmatpush1.msra.mxu0 0.0
    %531 = vmatprep.subr.mxu0 0.0
    %532 = vmatpush1.msra.mxu0 0.0
    %533 = vmatprep.subr.mxu0 0.0
    %534 = vmatpush1.msra.mxu0 0.0
    %535 = vmatprep.subr.mxu0 0.0
    %536 = vmatpush1.msra.mxu0 0.0
    %537 = vmatprep.subr.mxu0 0.0
    %538 = vmatpush1.msra.mxu0 0.0
    %539 = vmatprep.subr.mxu0 0.0
    %540 = vmatpush1.msra.mxu0 0.0
    %541 = vmatprep.subr.mxu0 0.0
    %542 = vmatpush1.msra.mxu0 0.0
    %543 = vmatprep.subr.mxu0 0.0
    %544 = vmatpush1.msra.mxu0 0.0
    %545 = vmatprep.subr.mxu0 0.0
    %546 = vmatpush1.msra.mxu0 0.0
    %547 = vmatprep.subr.mxu0 0.0
    %548 = vmatpush1.msra.mxu0 0.0
    %549 = vmatprep.mubr.f32.mxu0 0.0
    %550 = vmatmul.mubr.f32.gmra.mrb[0].mxu0 %v261
    %v551 = vpop.f32.mrb[0].mxu0
    %v552 = vadd.f32 %v467, %v551
    %v553 = vpop.f32.mrb[0].mxu0
    %554 = vmatprep.mubr.f32.mxu0 0.0
    %555 = vmatmul.mubr.f32.gmra.mrb[0].mxu0 %v262
    %v556 = vpop.f32.mrb[0].mxu0
    %v557 = vadd.f32 %v472, %v556
    %v558 = vpop.f32.mrb[0].mxu0
    %559 = vmatprep.mubr.f32.mxu0 0.0
    %560 = vmatmul.mubr.f32.gmra.mrb[0].mxu0 %v263
    %v561 = vpop.f32.mrb[0].mxu0
    %v562 = vadd.f32 %v477, %v561
    %v563 = vpop.f32.mrb[0].mxu0
    %564 = vmatprep.mubr.f32.mxu0 0.0
    %565 = vmatmul.mubr.f32.gmra.mrb[0].mxu0 %v264
    %v566 = vpop.f32.mrb[0].mxu0
    %v567 = vadd.f32 %v482, %v566
    %v568 = vpop.f32.mrb[0].mxu0
    %569 = vdwg.mxu0
    %v570 = vld [vmem:[#allocation10] sm:$0xff]
    %v571 = vld [vmem:[#allocation10 + $0x8] sm:$0xff]
    %v572 = vld [vmem:[#allocation10 + $0x10] sm:$0xff]
    %v573 = vld [vmem:[#allocation10 + $0x18] sm:$0xff]
    %v574 = vld [vmem:[#allocation10 + $0x20] sm:$0xff]
    %v575 = vld [vmem:[#allocation10 + $0x28] sm:$0xff]
    %v576 = vld [vmem:[#allocation10 + $0x30] sm:$0xff]
    %v577 = vld [vmem:[#allocation10 + $0x38] sm:$0xff]
    %v578 = vld [vmem:[#allocation10 + $0x40] sm:$0xff]
    %v579 = vld [vmem:[#allocation10 + $0x48] sm:$0xff]
    %v580 = vld [vmem:[#allocation10 + $0x50] sm:$0xff]
    %v581 = vld [vmem:[#allocation10 + $0x58] sm:$0xff]
    %v582 = vld [vmem:[#allocation10 + $0x60] sm:$0xff]
    %v583 = vld [vmem:[#allocation10 + $0x68] sm:$0xff]
    %v584 = vld [vmem:[#allocation10 + $0x70] sm:$0xff]
    %v585 = vld [vmem:[#allocation10 + $0x78] sm:$0xff]
    %586 = vmatprep.subr.mxu0 0.0
    %587 = vmatpush1.msra.mxu0 %v570
    %588 = vmatprep.subr.mxu0 0.0
    %589 = vmatpush1.msra.mxu0 %v571
    %590 = vmatprep.subr.mxu0 0.0
    %591 = vmatpush1.msra.mxu0 %v572
    %592 = vmatprep.subr.mxu0 0.0
    %593 = vmatpush1.msra.mxu0 %v573
    %594 = vmatprep.subr.mxu0 0.0
    %595 = vmatpush1.msra.mxu0 %v574
    %596 = vmatprep.subr.mxu0 0.0
    %597 = vmatpush1.msra.mxu0 %v575
    %598 = vmatprep.subr.mxu0 0.0
    %599 = vmatpush1.msra.mxu0 %v576
    %600 = vmatprep.subr.mxu0 0.0
    %601 = vmatpush1.msra.mxu0 %v577
    %602 = vmatprep.subr.mxu0 0.0
    %603 = vmatpush1.msra.mxu0 %v578
    %604 = vmatprep.subr.mxu0 0.0
    %605 = vmatpush1.msra.mxu0 %v579
    %606 = vmatprep.subr.mxu0 0.0
    %607 = vmatpush1.msra.mxu0 %v580
    %608 = vmatprep.subr.mxu0 0.0
    %609 = vmatpush1.msra.mxu0 %v581
    %610 = vmatprep.subr.mxu0 0.0
    %611 = vmatpush1.msra.mxu0 %v582
    %612 = vmatprep.subr.mxu0 0.0
    %613 = vmatpush1.msra.mxu0 %v583
    %614 = vmatprep.subr.mxu0 0.0
    %615 = vmatpush1.msra.mxu0 %v584
    %616 = vmatprep.subr.mxu0 0.0
    %617 = vmatpush1.msra.mxu0 %v585
    %618 = vmatprep.subr.mxu0 0.0
    %619 = vmatpush1.msra.mxu0 0.0
    %620 = vmatprep.subr.mxu0 0.0
    %621 = vmatpush1.msra.mxu0 0.0
    %622 = vmatprep.subr.mxu0 0.0
    %623 = vmatpush1.msra.mxu0 0.0
    %624 = vmatprep.subr.mxu0 0.0
    %625 = vmatpush1.msra.mxu0 0.0
    %626 = vmatprep.subr.mxu0 0.0
    %627 = vmatpush1.msra.mxu0 0.0
    %628 = vmatprep.subr.mxu0 0.0
    %629 = vmatpush1.msra.mxu0 0.0
    %630 = vmatprep.subr.mxu0 0.0
    %631 = vmatpush1.msra.mxu0 0.0
    %632 = vmatprep.subr.mxu0 0.0
    %633 = vmatpush1.msra.mxu0 0.0
    %634 = vmatprep.subr.mxu0 0.0
    %635 = vmatpush1.msra.mxu0 0.0
    %636 = vmatprep.subr.mxu0 0.0
    %637 = vmatpush1.msra.mxu0 0.0
    %638 = vmatprep.subr.mxu0 0.0
    %639 = vmatpush1.msra.mxu0 0.0
    %640 = vmatprep.subr.mxu0 0.0
    %641 = vmatpush1.msra.mxu0 0.0
    %642 = vmatprep.subr.mxu0 0.0
    %643 = vmatpush1.msra.mxu0 0.0
    %644 = vmatprep.subr.mxu0 0.0
    %645 = vmatpush1.msra.mxu0 0.0
    %646 = vmatprep.subr.mxu0 0.0
    %647 = vmatpush1.msra.mxu0 0.0
    %648 = vmatprep.subr.mxu0 0.0
    %649 = vmatpush1.msra.mxu0 0.0
    %650 = vmatprep.mubr.f32.mxu0 0.0
    %651 = vmatmul.mubr.f32.gmra.mrb[0].mxu0 %v364
    %v652 = vpop.f32.mrb[0].mxu0
    %v653 = vadd.f32 0.0, %v652
    %v654 = vpop.f32.mrb[0].mxu0
    %655 = vmatprep.mubr.f32.mxu0 0.0
    %656 = vmatmul.mubr.f32.gmra.mrb[0].mxu0 %v365
    %v657 = vpop.f32.mrb[0].mxu0
    %v658 = vadd.f32 0.0, %v657
    %v659 = vpop.f32.mrb[0].mxu0
    %660 = vmatprep.mubr.f32.mxu0 0.0
    %661 = vmatmul.mubr.f32.gmra.mrb[0].mxu0 %v366
    %v662 = vpop.f32.mrb[0].mxu0
    %v663 = vadd.f32 0.0, %v662
    %v664 = vpop.f32.mrb[0].mxu0
    %665 = vmatprep.mubr.f32.mxu0 0.0
    %666 = vmatmul.mubr.f32.gmra.mrb[0].mxu0 %v367
    %v667 = vpop.f32.mrb[0].mxu0
    %v668 = vadd.f32 0.0, %v667
    %v669 = vpop.f32.mrb[0].mxu0
    %670 = vdwg.mxu0
    %v671 = vadd.f32 %v552, %v653
    %v672 = vadd.f32 %v557, %v658
    %v673 = vadd.f32 %v562, %v663
    %v674 = vadd.f32 %v567, %v668
    %v675 = vld [vmem:[%s7] sm:$0x1]
    %v677 = vlaneseq
    %v678 = vshrl.u32 %v677, 7
    %v679 = vsub.s32 0, %v678
    %v680 = vrot.slane %v675, %v679
    %v682 = vadd.f32 %v671, %v680
    %v683 = vadd.f32 %v672, %v680
    %v684 = vadd.f32 %v673, %v680
    %v685 = vadd.f32 %v674, %v680
    %v686 = vxor.u32 %v682, 2147483648
    %v687 = vxor.u32 %v683, 2147483648
    %v688 = vxor.u32 %v684, 2147483648
    %v689 = vxor.u32 %v685, 2147483648
    %v690 = vmul.f32 %v686, 1.442695
    %v691 = vpow.pop %v690
    %v692 = vmul.f32 %v687, 1.442695
    %v693 = vpow.pop %v692
    %v694 = vmul.f32 %v688, 1.442695
    %v695 = vpow.pop %v694
    %v696 = vmul.f32 %v689, 1.442695
    %v697 = vpow.pop %v696
    %v698 = vadd.f32 %v691, 1.0
    %v699 = vadd.f32 %v693, 1.0
    %v700 = vadd.f32 %v695, 1.0
    %v701 = vadd.f32 %v697, 1.0
    %v702 = vrcp.pop %v698
    %v703 = vmul.f32 1.0, %v702
    %v704 = vrcp.pop %v699
    %v705 = vmul.f32 1.0, %v704
    %v706 = vrcp.pop %v700
    %v707 = vmul.f32 1.0, %v706
    %v708 = vrcp.pop %v701
    %v709 = vmul.f32 1.0, %v708
    %710 = vst [vmem:[#allocation11] sm:$0xff] %v703
    %711 = vst [vmem:[#allocation11 + $0x8] sm:$0xff] %v705
    %712 = vst [vmem:[#allocation11 + $0x10] sm:$0xff] %v707
    %713 = vst [vmem:[#allocation11 + $0x18] sm:$0xff] %v709
    // Predicated region
    $region54: #{tpu_custom_call.1} parent=1 // pred_check
      _
    $region55: #{tpu_custom_call.1} parent=1 // pred_check_branch
      %715 = sbr.rel (0) target = $region57
    $region56: #{tpu_custom_call.1} parent=1 // pred_region
      %s717 = ssub.s32 512, 512
      %718 = vsyncadd [#allocation4], %s717
      %s719 = sshll.u32 [#allocation11], 4
      %s720 = int_to_ptr.vmem [resolvable:$true] %s719
      %725 = dma.vmem_to_hbm [thread:$0]  %s720, 512, %s8, [#allocation4], 128, 128, 8
    $region57: #{tpu_custom_call.1} parent=1 // pred_fallthru
      _
    // Predicated region
    $region58: #{tpu_custom_call.1} parent=1 // pred_check
      _
    $region59: #{tpu_custom_call.1} parent=1 // pred_check_branch
      %727 = sbr.rel (0) target = $region61
    $region60: #{tpu_custom_call.1} parent=1 // pred_region
      %728 = dma.done [#allocation4], 512
    $region61: #{tpu_custom_call.1} parent=1 // pred_fallthru
      _
    %729 = vsyncpa [#allocation3], 1
    %730 = vsyncpa [#allocation6], 1
    %731 = vsyncpa [#allocation9], 1
    %732 = vsyncpa [#allocation4], 1

</llo_original>
